<compile_context>
chip_gen: v7x
topology: tpu7x:2x2x1
jax: 0.10.0
libtpu: 0.0.40
codegen_flags: <defaults>
</compile_context>

<pallas_src>
import functools

import jax
import jax.numpy as jnp
from jax.experimental import pallas as pl
from jax.experimental.pallas import tpu as pltpu

IN_DIM = 36
H1_DIM = 512
H2_DIM = 256
OUT_DIM = 3
OUT_PAD = 128          # lane-dense padded output width
DEFAULT_TILE_B = 1024  # amortizes ~0.35us/step grid overhead, fits VMEM on v5e/v6e/v7x


def _round_up(n, m):
    return ((n + m - 1) // m) * m


def receptor_net_kernel(x_ref, w1_ref, b1_ref, w2_ref, b2_ref, w3_ref, b3_ref, o_ref):
    # Layer 1: (TB,36)bf16 @ (36,512)bf16 -> f32 acc; bias + ReLU in f32.
    h1 = jnp.dot(x_ref[...], w1_ref[...], preferred_element_type=jnp.float32)
    h1 = jnp.maximum(h1 + b1_ref[...], 0.0)
    # Layer 2: (TB,512)bf16 @ (512,256)bf16 -> f32 acc; bias + ReLU in f32.
    h2 = jnp.dot(h1.astype(jnp.bfloat16), w2_ref[...],
                 preferred_element_type=jnp.float32)
    h2 = jnp.maximum(h2 + b2_ref[...], 0.0)
    # Output layer (zero-padded to 128 lanes for a lane-dense store).
    out = jnp.dot(h2.astype(jnp.bfloat16), w3_ref[...],
                  preferred_element_type=jnp.float32)
    o_ref[...] = (out + b3_ref[...]).astype(o_ref.dtype)


def prepare_params(params):
    """One-time (off hot path) weight prep: transpose (out,in)->(in,out), cast to
    bf16, pad the output projection to 128 lanes. Biases stay f32."""
    w1 = params["fc_1_w"].T.astype(jnp.bfloat16)          # (36, 512)
    b1 = params["fc_1_b"][None, :].astype(jnp.float32)    # (1, 512)
    w2 = params["fc_2_w"].T.astype(jnp.bfloat16)          # (512, 256)
    b2 = params["fc_2_b"][None, :].astype(jnp.float32)    # (1, 256)
    w3 = jnp.zeros((H2_DIM, OUT_PAD), jnp.float32)
    w3 = w3.at[:, :OUT_DIM].set(params["out_w"].T).astype(jnp.bfloat16)  # (256, 128)
    b3 = jnp.zeros((1, OUT_PAD), jnp.float32)
    b3 = b3.at[:, :OUT_DIM].set(params["out_b"][None, :])                # (1, 128)
    return (w1, b1, w2, b2, w3, b3)


@functools.partial(jax.jit, static_argnames=("tile_b",))
def receptor_net_forward(x, prepared, tile_b=DEFAULT_TILE_B):
    """x: (B, 36) float32. prepared: output of prepare_params()."""
    B = x.shape[0]
    w1, b1, w2, b2, w3, b3 = prepared

    # Tile size: multiple of 8, capped at tile_b; pad B to a multiple of it.
    tb = min(tile_b, _round_up(B, 8))
    b_pad = _round_up(B, tb)

    x_bf = x.astype(jnp.bfloat16)
    if b_pad != B:
        x_bf = jnp.pad(x_bf, ((0, b_pad - B), (0, 0)))

    const2 = lambda i: (0, 0)  # weights/biases: same block every step -> VMEM-resident
    out = pl.pallas_call(
        receptor_net_kernel,
        out_shape=jax.ShapeDtypeStruct((b_pad, OUT_PAD), jnp.float32),
        grid=(b_pad // tb,),
        in_specs=[
            pl.BlockSpec((tb, IN_DIM), lambda i: (i, 0)),       # x tile (pipelined)
            pl.BlockSpec((IN_DIM, H1_DIM), const2),             # w1
            pl.BlockSpec((1, H1_DIM), const2),                  # b1
            pl.BlockSpec((H1_DIM, H2_DIM), const2),             # w2
            pl.BlockSpec((1, H2_DIM), const2),                  # b2
            pl.BlockSpec((H2_DIM, OUT_PAD), const2),            # w3 (padded)
            pl.BlockSpec((1, OUT_PAD), const2),                 # b3 (padded)
        ],
        out_specs=pl.BlockSpec((tb, OUT_PAD), lambda i: (i, 0)),
        compiler_params=pltpu.CompilerParams(
            dimension_semantics=("parallel",),   # v7x: shard batch across 2 TCs
            vmem_limit_bytes=32 << 20,
        ),
    )(x_bf, w1, b1, w2, b2, w3, b3)

    return out[:B, :OUT_DIM]


def init_params(key):
    """Deterministic init matching nn.Linear default (uniform +/- 1/sqrt(fan_in))."""
    ks = jax.random.split(key, 6)

    def lin(kw, kb, fan_in, fan_out):
        bound = 1.0 / jnp.sqrt(float(fan_in))
        w = jax.random.uniform(kw, (fan_out, fan_in), jnp.float32, -bound, bound)
        b = jax.random.uniform(kb, (fan_out,), jnp.float32, -bound, bound)
        return w, b

    w1, b1 = lin(ks[0], ks[1], IN_DIM, H1_DIM)
    w2, b2 = lin(ks[2], ks[3], H1_DIM, H2_DIM)
    w3, b3 = lin(ks[4], ks[5], H2_DIM, OUT_DIM)
    return {
        "fc_1_w": w1, "fc_1_b": b1,
        "fc_2_w": w2, "fc_2_b": b2,
        "out_w": w3, "out_b": b3,
    }


def reference_forward(x, p):
    h1 = jnp.maximum(x @ p["fc_1_w"].T + p["fc_1_b"], 0.0)
    h2 = jnp.maximum(h1 @ p["fc_2_w"].T + p["fc_2_b"], 0.0)
    return h2 @ p["out_w"].T + p["out_b"]


if __name__ == "__main__":
    key = jax.random.PRNGKey(0)
    k_param, k_x = jax.random.split(key)
    params = init_params(k_param)
    prepared = prepare_params(params)

    B = 8  # small batch; features fixed at 36 by the module
    x = jax.random.normal(k_x, (B, IN_DIM), dtype=jnp.float32)

    out = receptor_net_forward(x, prepared)
    out = jax.block_until_ready(out)

    ref = reference_forward(x, params)
    assert out.shape == (B, OUT_DIM)
    # bf16 operands with f32 accumulation: loosen tolerance vs the f32 reference.
    assert jnp.allclose(out, ref, atol=5e-2, rtol=5e-2), (
        float(jnp.max(jnp.abs(out - ref)))
    )

    print("KERNEL_OK")
</pallas_src>

<mosaic_0001>
module attributes {stable_mosaic.version = 11 : i64} {
  func.func @receptor_net_kernel(%arg0: i32, %arg1: memref<8x36xbf16, #tpu.memory_space<vmem>>, %arg2: memref<36x512xbf16, #tpu.memory_space<vmem>>, %arg3: memref<1x512xf32, #tpu.memory_space<vmem>>, %arg4: memref<512x256xbf16, #tpu.memory_space<vmem>>, %arg5: memref<1x256xf32, #tpu.memory_space<vmem>>, %arg6: memref<256x128xbf16, #tpu.memory_space<vmem>>, %arg7: memref<1x128xf32, #tpu.memory_space<vmem>>, %arg8: memref<8x128xf32, #tpu.memory_space<vmem>>) attributes {dimension_semantics = [#tpu.dimension_semantics<parallel>], iteration_bounds = array<i64: 1>, scalar_prefetch = 0 : i64, scratch_operands = 0 : i64, tpu.core_type = #tpu.core_type<tc>, window_params = [{transform_indices = @transform_0, window_bounds = array<i64: 8, 36>}, {pipeline_mode = #tpu.pipeline_mode<synchronous>, transform_indices = @transform_1, window_bounds = array<i64: 36, 512>}, {pipeline_mode = #tpu.pipeline_mode<synchronous>, transform_indices = @transform_2, window_bounds = array<i64: 1, 512>}, {pipeline_mode = #tpu.pipeline_mode<synchronous>, transform_indices = @transform_3, window_bounds = array<i64: 512, 256>}, {pipeline_mode = #tpu.pipeline_mode<synchronous>, transform_indices = @transform_4, window_bounds = array<i64: 1, 256>}, {pipeline_mode = #tpu.pipeline_mode<synchronous>, transform_indices = @transform_5, window_bounds = array<i64: 256, 128>}, {pipeline_mode = #tpu.pipeline_mode<synchronous>, transform_indices = @transform_6, window_bounds = array<i64: 1, 128>}, {transform_indices = @transform_7, window_bounds = array<i64: 8, 128>}]} {
    %c0 = arith.constant 0 : index
    %c0_0 = arith.constant 0 : index
    %0 = vector.load %arg1[%c0, %c0_0] : memref<8x36xbf16, #tpu.memory_space<vmem>>, vector<8x36xbf16>
    %c0_1 = arith.constant 0 : index
    %c0_2 = arith.constant 0 : index
    %1 = vector.load %arg2[%c0_1, %c0_2] : memref<36x512xbf16, #tpu.memory_space<vmem>>, vector<36x512xbf16>
    %cst = arith.constant dense<0.000000e+00> : vector<8x512xf32>
    %2 = tpu.matmul %0, %1, %cst {dimension_numbers = #tpu.dot_dimension_numbers<[1], [0], [0], [1], [0, 0, 1, 1], [], []>} : vector<8x36xbf16>, vector<36x512xbf16>, vector<8x512xf32> -> vector<8x512xf32>
    %c0_3 = arith.constant 0 : index
    %c0_4 = arith.constant 0 : index
    %3 = vector.load %arg3[%c0_3, %c0_4] : memref<1x512xf32, #tpu.memory_space<vmem>>, vector<1x512xf32>
    %4 = vector.broadcast %3 : vector<1x512xf32> to vector<8x512xf32>
    %5 = arith.addf %2, %4 : vector<8x512xf32>
    %cst_5 = arith.constant 0.000000e+00 : f32
    %6 = vector.broadcast %cst_5 : f32 to vector<8x512xf32>
    %7 = arith.maximumf %5, %6 : vector<8x512xf32>
    %8 = arith.truncf %7 : vector<8x512xf32> to vector<8x512xbf16>
    %c0_6 = arith.constant 0 : index
    %c0_7 = arith.constant 0 : index
    %9 = vector.load %arg4[%c0_6, %c0_7] : memref<512x256xbf16, #tpu.memory_space<vmem>>, vector<512x256xbf16>
    %cst_8 = arith.constant dense<0.000000e+00> : vector<8x256xf32>
    %10 = tpu.matmul %8, %9, %cst_8 {dimension_numbers = #tpu.dot_dimension_numbers<[1], [0], [0], [1], [0, 0, 1, 1], [], []>} : vector<8x512xbf16>, vector<512x256xbf16>, vector<8x256xf32> -> vector<8x256xf32>
    %c0_9 = arith.constant 0 : index
    %c0_10 = arith.constant 0 : index
    %11 = vector.load %arg5[%c0_9, %c0_10] : memref<1x256xf32, #tpu.memory_space<vmem>>, vector<1x256xf32>
    %12 = vector.broadcast %11 : vector<1x256xf32> to vector<8x256xf32>
    %13 = arith.addf %10, %12 : vector<8x256xf32>
    %cst_11 = arith.constant 0.000000e+00 : f32
    %14 = vector.broadcast %cst_11 : f32 to vector<8x256xf32>
    %15 = arith.maximumf %13, %14 : vector<8x256xf32>
    %16 = arith.truncf %15 : vector<8x256xf32> to vector<8x256xbf16>
    %c0_12 = arith.constant 0 : index
    %c0_13 = arith.constant 0 : index
    %17 = vector.load %arg6[%c0_12, %c0_13] : memref<256x128xbf16, #tpu.memory_space<vmem>>, vector<256x128xbf16>
    %cst_14 = arith.constant dense<0.000000e+00> : vector<8x128xf32>
    %18 = tpu.matmul %16, %17, %cst_14 {dimension_numbers = #tpu.dot_dimension_numbers<[1], [0], [0], [1], [0, 0, 1, 1], [], []>} : vector<8x256xbf16>, vector<256x128xbf16>, vector<8x128xf32> -> vector<8x128xf32>
    %c0_15 = arith.constant 0 : index
    %c0_16 = arith.constant 0 : index
    %19 = vector.load %arg7[%c0_15, %c0_16] : memref<1x128xf32, #tpu.memory_space<vmem>>, vector<1x128xf32>
    %20 = vector.broadcast %19 : vector<1x128xf32> to vector<8x128xf32>
    %21 = arith.addf %18, %20 : vector<8x128xf32>
    %c0_17 = arith.constant 0 : index
    %c0_18 = arith.constant 0 : index
    %22 = vector.load %arg8[%c0_17, %c0_18] : memref<8x128xf32, #tpu.memory_space<vmem>>, vector<8x128xf32>
    tpu.vector_store %arg8[%c0_17, %c0_18], %21 {strides = array<i32>} : memref<8x128xf32, #tpu.memory_space<vmem>>, vector<8x128xf32>,
    return
  }
  func.func @transform_0(%arg0: i32) -> (i32, i32) {
    %c0_i32 = arith.constant 0 : i32
    %c0_i32_0 = arith.constant 0 : i32
    return %arg0, %c0_i32 : i32, i32
  }
  func.func @transform_1(%arg0: i32) -> (i32, i32) {
    %c0_i32 = arith.constant 0 : i32
    %c0_i32_0 = arith.constant 0 : i32
    %c0_i32_1 = arith.constant 0 : i32
    return %c0_i32, %c0_i32_0 : i32, i32
  }
  func.func @transform_2(%arg0: i32) -> (i32, i32) {
    %c0_i32 = arith.constant 0 : i32
    %c0_i32_0 = arith.constant 0 : i32
    %c0_i32_1 = arith.constant 0 : i32
    return %c0_i32, %c0_i32_0 : i32, i32
  }
  func.func @transform_3(%arg0: i32) -> (i32, i32) {
    %c0_i32 = arith.constant 0 : i32
    %c0_i32_0 = arith.constant 0 : i32
    %c0_i32_1 = arith.constant 0 : i32
    return %c0_i32, %c0_i32_0 : i32, i32
  }
  func.func @transform_4(%arg0: i32) -> (i32, i32) {
    %c0_i32 = arith.constant 0 : i32
    %c0_i32_0 = arith.constant 0 : i32
    %c0_i32_1 = arith.constant 0 : i32
    return %c0_i32, %c0_i32_0 : i32, i32
  }
  func.func @transform_5(%arg0: i32) -> (i32, i32) {
    %c0_i32 = arith.constant 0 : i32
    %c0_i32_0 = arith.constant 0 : i32
    %c0_i32_1 = arith.constant 0 : i32
    return %c0_i32, %c0_i32_0 : i32, i32
  }
  func.func @transform_6(%arg0: i32) -> (i32, i32) {
    %c0_i32 = arith.constant 0 : i32
    %c0_i32_0 = arith.constant 0 : i32
    %c0_i32_1 = arith.constant 0 : i32
    return %c0_i32, %c0_i32_0 : i32, i32
  }
  func.func @transform_7(%arg0: i32) -> (i32, i32) {
    %c0_i32 = arith.constant 0 : i32
    %c0_i32_0 = arith.constant 0 : i32
    return %arg0, %c0_i32 : i32, i32
  }
}

</mosaic_0001>

<llo_original>
// kernel: receptor_net_forward.1
$region0: #{receptor_net_forward.1}
  #allocation0 [shape = 'u32[]', space=smem, size = 0x4, offset = 0x4, fixed_abs, tag = 'smem constant byte address 0x4 - core index']
  #allocation1 [shape = 'u32[144,128]{1,0:T(1,128)}', space=vmem, size = 0x12000, scoped, tag = 'internal scratch']
  %s0 = inlined_call_operand.vmem [shape: bf16[8,36], index: 0, kind: input, shape index: {}]
  %s1 = inlined_call_operand.hbm [shape: bf16[36,512], index: 1, kind: input, shape index: {}]
  %s2 = inlined_call_operand.vmem [shape: f32[1,512], index: 2, kind: input, shape index: {}]
  %s3 = inlined_call_operand.hbm [shape: bf16[512,256], index: 3, kind: input, shape index: {}]
  %s4 = inlined_call_operand.vmem [shape: f32[1,256], index: 4, kind: input, shape index: {}]
  %s5 = inlined_call_operand.hbm [shape: bf16[256,128], index: 5, kind: input, shape index: {}]
  %s6 = inlined_call_operand.vmem [shape: f32[1,128], index: 6, kind: input, shape index: {}]
  %s7 = inlined_call_operand.vmem [shape: f32[8,128], index: 7, kind: output, shape index: {}]
  %s8 = sld [smem:[#allocation0]]
  $region50: #{receptor_net_forward.1} parent=0
    _
  %s10 = ssub.s32 1, %s8
  %s11 = scalar_select 0, %s10, %s8
  $region1: #{receptor_net_forward.1} parent=0
    #allocation2 [shape = 'u8[40960]{0}', space=vmem, size = 0xa000, scoped, tag = 'input window, operand 1, single buffered']
    #allocation3 [shape = 's32[1]{0}', space=sflag, size = 0x4, scoped, tag = 'scoped memory for receptor_net_forward.1']
    #allocation4 [shape = 'u8[262144]{0}', space=vmem, size = 0x40000, scoped, tag = 'input window, operand 3, single buffered']
    #allocation5 [shape = 's32[1]{0}', space=sflag, size = 0x4, scoped, tag = 'scoped memory for receptor_net_forward.1']
    #allocation6 [shape = 'u8[65536]{0}', space=vmem, size = 0x10000, scoped, tag = 'input window, operand 5, single buffered']
    %12 = vsyncpa [#allocation3], 0
    %13 = vsyncpa [#allocation5], 0
    // Predicated region
    $region2: #{receptor_net_forward.1} parent=1 // pred_check
      _
    $region3: #{receptor_net_forward.1} parent=1 // pred_check_branch
      %15 = sbr.rel (0) target = $region5
    $region4: #{receptor_net_forward.1} parent=1 // pred_region
      _
    $region5: #{receptor_net_forward.1} parent=1 // pred_fallthru
      _
    // Predicated region
    $region6: #{receptor_net_forward.1} parent=1 // pred_check
      _
    $region7: #{receptor_net_forward.1} parent=1 // pred_check_branch
      %17 = sbr.rel (0) target = $region9
    $region8: #{receptor_net_forward.1} parent=1 // pred_region
      %s19 = ssub.s32 1280, 1280
      %20 = vsyncadd [#allocation3], %s19
      %s21 = sshll.u32 [#allocation2], 4
      %s22 = int_to_ptr.vmem [resolvable:$true] %s21
      %27 = dma.hbm_to_vmem [thread:$0]  %s1, 1280, %s22, [#allocation3], 256, 256, 16
    $region9: #{receptor_net_forward.1} parent=1 // pred_fallthru
      _
    // Predicated region
    $region10: #{receptor_net_forward.1} parent=1 // pred_check
      _
    $region11: #{receptor_net_forward.1} parent=1 // pred_check_branch
      %29 = sbr.rel (0) target = $region13
    $region12: #{receptor_net_forward.1} parent=1 // pred_region
      _
    $region13: #{receptor_net_forward.1} parent=1 // pred_fallthru
      _
    // Predicated region
    $region14: #{receptor_net_forward.1} parent=1 // pred_check
      _
    $region15: #{receptor_net_forward.1} parent=1 // pred_check_branch
      %31 = sbr.rel (0) target = $region17
    $region16: #{receptor_net_forward.1} parent=1 // pred_region
      %s33 = ssub.s32 8192, 8192
      %34 = vsyncadd [#allocation5], %s33
      %s35 = sshll.u32 [#allocation4], 4
      %s36 = int_to_ptr.vmem [resolvable:$true] %s35
      %41 = dma.hbm_to_vmem [thread:$0]  %s3, 8192, %s36, [#allocation5], 128, 128, 8
    $region17: #{receptor_net_forward.1} parent=1 // pred_fallthru
      _
    // Predicated region
    $region18: #{receptor_net_forward.1} parent=1 // pred_check
      _
    $region19: #{receptor_net_forward.1} parent=1 // pred_check_branch
      %43 = sbr.rel (0) target = $region21
    $region20: #{receptor_net_forward.1} parent=1 // pred_region
      _
    $region21: #{receptor_net_forward.1} parent=1 // pred_fallthru
      _
    // Predicated region
    $region22: #{receptor_net_forward.1} parent=1 // pred_check
      _
    $region23: #{receptor_net_forward.1} parent=1 // pred_check_branch
      %45 = sbr.rel (0) target = $region25
    $region24: #{receptor_net_forward.1} parent=1 // pred_region
      %s47 = ssub.s32 2048, 2048
      %48 = vsyncadd [#allocation5], %s47
      %s49 = sshll.u32 [#allocation6], 4
      %s50 = int_to_ptr.vmem [resolvable:$true] %s49
      %55 = dma.hbm_to_vmem [thread:$0]  %s5, 2048, %s50, [#allocation5], 64, 64, 4
    $region25: #{receptor_net_forward.1} parent=1 // pred_fallthru
      _
    // Predicated region
    $region26: #{receptor_net_forward.1} parent=1 // pred_check
      _
    $region27: #{receptor_net_forward.1} parent=1 // pred_check_branch
      %57 = sbr.rel (0) target = $region29
    $region28: #{receptor_net_forward.1} parent=1 // pred_region
      _
    $region29: #{receptor_net_forward.1} parent=1 // pred_fallthru
      _
    // Predicated region
    $region30: #{receptor_net_forward.1} parent=1 // pred_check
      _
    $region31: #{receptor_net_forward.1} parent=1 // pred_check_branch
      %59 = sbr.rel (0) target = $region33
    $region32: #{receptor_net_forward.1} parent=1 // pred_region
      %60 = dma.done [#allocation3], 1280
    $region33: #{receptor_net_forward.1} parent=1 // pred_fallthru
      _
    // Predicated region
    $region34: #{receptor_net_forward.1} parent=1 // pred_check
      _
    $region35: #{receptor_net_forward.1} parent=1 // pred_check_branch
      %62 = sbr.rel (0) target = $region37
    $region36: #{receptor_net_forward.1} parent=1 // pred_region
      %63 = dma.done [#allocation5], 8192
    $region37: #{receptor_net_forward.1} parent=1 // pred_fallthru
      _
    // Predicated region
    $region38: #{receptor_net_forward.1} parent=1 // pred_check
      _
    $region39: #{receptor_net_forward.1} parent=1 // pred_check_branch
      %65 = sbr.rel (0) target = $region41
    $region40: #{receptor_net_forward.1} parent=1 // pred_region
      %66 = dma.done [#allocation5], 2048
    $region41: #{receptor_net_forward.1} parent=1 // pred_fallthru
      _
    %v68 = vld [vmem:[%s0] sm:$0xf]
    %v69 = vld [vmem:[#allocation2] sm:$0xff]
    %v70 = vld [vmem:[#allocation2 + $0x8] sm:$0xff]
    %v71 = vld [vmem:[#allocation2 + $0x10] sm:$0xff]
    %v72 = vld [vmem:[#allocation2 + $0x18] sm:$0xff]
    %v73 = vld [vmem:[#allocation2 + $0x20] sm:$0xff]
    %v74 = vld [vmem:[#allocation2 + $0x28] sm:$0xff]
    %v75 = vld [vmem:[#allocation2 + $0x30] sm:$0xff]
    %v76 = vld [vmem:[#allocation2 + $0x38] sm:$0xff]
    %v77 = vld [vmem:[#allocation2 + $0x40] sm:$0x33]
    %v78 = vld [vmem:[#allocation2 + $0x48] sm:$0x33]
    %v79 = vld [vmem:[%s2] sm:$0xf]
    %v81 = vlaneseq
    %v82 = vshrl.u32 %v81, 7
    %v83 = vsub.s32 0, %v82
    %v84 = vrot.slane %v79, %v83
    %v85 = vlaneseq
    %v86 = vshrl.u32 %v85, 7
    %v87 = vsub.s32 1, %v86
    %v88 = vrot.slane %v79, %v87
    %v89 = vlaneseq
    %v90 = vshrl.u32 %v89, 7
    %v91 = vsub.s32 2, %v90
    %v92 = vrot.slane %v79, %v91
    %v93 = vlaneseq
    %v94 = vshrl.u32 %v93, 7
    %v95 = vsub.s32 3, %v94
    %v96 = vrot.slane %v79, %v95
    %v111 = vunpack.c.l.b16 %v69
    %v112 = vunpack.c.h.b16 %v69
    %v113 = vunpack.c.l.b16 %v70
    %v114 = vunpack.c.h.b16 %v70
    %v115 = vunpack.c.l.b16 %v71
    %v116 = vunpack.c.h.b16 %v71
    %v117 = vunpack.c.l.b16 %v72
    %v118 = vunpack.c.h.b16 %v72
    %v119 = vunpack.c.l.b16 %v73
    %v120 = vunpack.c.h.b16 %v73
    %v121 = vunpack.c.l.b16 %v74
    %v122 = vunpack.c.h.b16 %v74
    %v123 = vunpack.c.l.b16 %v75
    %v124 = vunpack.c.h.b16 %v75
    %v125 = vunpack.c.l.b16 %v76
    %v126 = vunpack.c.h.b16 %v76
    %v127 = vunpack.c.l.b16 %v77
    %v128 = vunpack.c.h.b16 %v77
    %v129 = vunpack.c.l.b16 %v78
    %v130 = vunpack.c.h.b16 %v78
    %v131 = vpack.c.b16 %v115, %v111
    %v132 = vpack.c.b16 %v116, %v112
    %v133 = vpack.c.b16 %v117, %v113
    %v134 = vpack.c.b16 %v118, %v114
    %v135 = vpack.c.b16 %v123, %v119
    %v136 = vpack.c.b16 %v124, %v120
    %v137 = vpack.c.b16 %v125, %v121
    %v138 = vpack.c.b16 %v126, %v122
    %v139 = vpack.c.b16 %v127, %v127
    %v140 = vpack.c.b16 %v128, %v128
    %v141 = vpack.c.b16 %v129, %v129
    %v142 = vpack.c.b16 %v130, %v130
    %vm151 = vcmask 293888
    %v153 = vsel %vm151, %v68, 0
    %vm155 = vcmask 1041408
    %v157 = vsel %vm155, %v139, 0
    %v160 = vsel %vm155, %v140, 0
    %v163 = vsel %vm155, %v141, 0
    %v166 = vsel %vm155, %v142, 0
    %168 = vmatprep.subr.bf16.mxu0 %v132
    %169 = vmatpush1.bf16.msra.mxu0 %v131
    %170 = vmatprep.subr.bf16.mxu0 %v136
    %171 = vmatpush1.bf16.msra.mxu0 %v135
    %172 = vmatprep.subr.bf16.mxu0 %v160
    %173 = vmatpush1.bf16.msra.mxu0 %v157
    %174 = vmatprep.subr.bf16.mxu0 0
    %175 = vmatpush1.bf16.msra.mxu0 0
    %176 = vmatprep.subr.bf16.mxu0 0
    %177 = vmatpush1.bf16.msra.mxu0 0
    %178 = vmatprep.subr.bf16.mxu0 0
    %179 = vmatpush1.bf16.msra.mxu0 0
    %180 = vmatprep.subr.bf16.mxu0 0
    %181 = vmatpush1.bf16.msra.mxu0 0
    %182 = vmatprep.subr.bf16.mxu0 0
    %183 = vmatpush1.bf16.msra.mxu0 0
    %184 = vmatprep.subr.bf16.mxu0 0
    %185 = vmatpush1.bf16.msra.mxu0 0
    %186 = vmatprep.subr.bf16.mxu0 0
    %187 = vmatpush1.bf16.msra.mxu0 0
    %188 = vmatprep.subr.bf16.mxu0 0
    %189 = vmatpush1.bf16.msra.mxu0 0
    %190 = vmatprep.subr.bf16.mxu0 0
    %191 = vmatpush1.bf16.msra.mxu0 0
    %192 = vmatprep.subr.bf16.mxu0 0
    %193 = vmatpush1.bf16.msra.mxu0 0
    %194 = vmatprep.subr.bf16.mxu0 0
    %195 = vmatpush1.bf16.msra.mxu0 0
    %196 = vmatprep.subr.bf16.mxu0 0
    %197 = vmatpush1.bf16.msra.mxu0 0
    %198 = vmatprep.subr.bf16.mxu0 0
    %199 = vmatpush1.bf16.msra.mxu0 0
    %200 = vmatprep.mubr.bf16.mxu0 0
    %201 = vmatmul.mubr.bf16.gmra.mrb[0].mxu0 %v153
    %v202 = vpop.f32.mrb[0].mxu0
    %v203 = vadd.f32 %v84, %v202
    %v204 = vpop.f32.mrb[0].mxu0
    %v205 = vadd.f32 %v88, %v204
    %v206 = vpop.f32.mrb[0].mxu0
    %v207 = vpop.f32.mrb[0].mxu0
    %208 = vdwg.mxu0
    %209 = vmatprep.subr.bf16.mxu0 %v134
    %210 = vmatpush1.bf16.msra.mxu0 %v133
    %211 = vmatprep.subr.bf16.mxu0 %v138
    %212 = vmatpush1.bf16.msra.mxu0 %v137
    %213 = vmatprep.subr.bf16.mxu0 %v166
    %214 = vmatpush1.bf16.msra.mxu0 %v163
    %215 = vmatprep.subr.bf16.mxu0 0
    %216 = vmatpush1.bf16.msra.mxu0 0
    %217 = vmatprep.subr.bf16.mxu0 0
    %218 = vmatpush1.bf16.msra.mxu0 0
    %219 = vmatprep.subr.bf16.mxu0 0
    %220 = vmatpush1.bf16.msra.mxu0 0
    %221 = vmatprep.subr.bf16.mxu0 0
    %222 = vmatpush1.bf16.msra.mxu0 0
    %223 = vmatprep.subr.bf16.mxu0 0
    %224 = vmatpush1.bf16.msra.mxu0 0
    %225 = vmatprep.subr.bf16.mxu0 0
    %226 = vmatpush1.bf16.msra.mxu0 0
    %227 = vmatprep.subr.bf16.mxu0 0
    %228 = vmatpush1.bf16.msra.mxu0 0
    %229 = vmatprep.subr.bf16.mxu0 0
    %230 = vmatpush1.bf16.msra.mxu0 0
    %231 = vmatprep.subr.bf16.mxu0 0
    %232 = vmatpush1.bf16.msra.mxu0 0
    %233 = vmatprep.subr.bf16.mxu0 0
    %234 = vmatpush1.bf16.msra.mxu0 0
    %235 = vmatprep.subr.bf16.mxu0 0
    %236 = vmatpush1.bf16.msra.mxu0 0
    %237 = vmatprep.subr.bf16.mxu0 0
    %238 = vmatpush1.bf16.msra.mxu0 0
    %239 = vmatprep.subr.bf16.mxu0 0
    %240 = vmatpush1.bf16.msra.mxu0 0
    %241 = vmatprep.mubr.bf16.mxu0 0
    %242 = vmatmul.mubr.bf16.gmra.mrb[0].mxu0 %v153
    %v243 = vpop.f32.mrb[0].mxu0
    %v244 = vadd.f32 %v92, %v243
    %v245 = vpop.f32.mrb[0].mxu0
    %v246 = vadd.f32 %v96, %v245
    %v247 = vpop.f32.mrb[0].mxu0
    %v248 = vpop.f32.mrb[0].mxu0
    %249 = vdwg.mxu0
    %v250 = vmax.f32 %v203, 0.0
    %v251 = vmax.f32 %v205, 0.0
    %v252 = vmax.f32 %v244, 0.0
    %v253 = vmax.f32 %v246, 0.0
    %v254 = vpack.c.bf16 %v250, %v250
    %v255 = vpack.c.bf16 %v251, %v251
    %v256 = vpack.c.bf16 %v252, %v252
    %v257 = vpack.c.bf16 %v253, %v253
    %v258 = vld [vmem:[#allocation4] sm:$0xff]
    %v259 = vld [vmem:[#allocation4 + $0x8] sm:$0xff]
    %v260 = vld [vmem:[#allocation4 + $0x10] sm:$0xff]
    %v261 = vld [vmem:[#allocation4 + $0x18] sm:$0xff]
    %v262 = vld [vmem:[#allocation4 + $0x20] sm:$0xff]
    %v263 = vld [vmem:[#allocation4 + $0x28] sm:$0xff]
    %v264 = vld [vmem:[#allocation4 + $0x30] sm:$0xff]
    %v265 = vld [vmem:[#allocation4 + $0x38] sm:$0xff]
    %v266 = vld [vmem:[#allocation4 + $0x40] sm:$0xff]
    %v267 = vld [vmem:[#allocation4 + $0x48] sm:$0xff]
    %v268 = vld [vmem:[#allocation4 + $0x50] sm:$0xff]
    %v269 = vld [vmem:[#allocation4 + $0x58] sm:$0xff]
    %v270 = vld [vmem:[#allocation4 + $0x60] sm:$0xff]
    %v271 = vld [vmem:[#allocation4 + $0x68] sm:$0xff]
    %v272 = vld [vmem:[#allocation4 + $0x70] sm:$0xff]
    %v273 = vld [vmem:[#allocation4 + $0x78] sm:$0xff]
    %v274 = vld [vmem:[#allocation4 + $0x80] sm:$0xff]
    %v275 = vld [vmem:[#allocation4 + $0x88] sm:$0xff]
    %v276 = vld [vmem:[#allocation4 + $0x90] sm:$0xff]
    %v277 = vld [vmem:[#allocation4 + $0x98] sm:$0xff]
    %v278 = vld [vmem:[#allocation4 + $0xa0] sm:$0xff]
    %v279 = vld [vmem:[#allocation4 + $0xa8] sm:$0xff]
    %v280 = vld [vmem:[#allocation4 + $0xb0] sm:$0xff]
    %v281 = vld [vmem:[#allocation4 + $0xb8] sm:$0xff]
    %v282 = vld [vmem:[#allocation4 + $0xc0] sm:$0xff]
    %v283 = vld [vmem:[#allocation4 + $0xc8] sm:$0xff]
    %v284 = vld [vmem:[#allocation4 + $0xd0] sm:$0xff]
    %v285 = vld [vmem:[#allocation4 + $0xd8] sm:$0xff]
    %v286 = vld [vmem:[#allocation4 + $0xe0] sm:$0xff]
    %v287 = vld [vmem:[#allocation4 + $0xe8] sm:$0xff]
    %v288 = vld [vmem:[#allocation4 + $0xf0] sm:$0xff]
    %v289 = vld [vmem:[#allocation4 + $0xf8] sm:$0xff]
    %v290 = vld [vmem:[#allocation4 + $0x100] sm:$0xff]
    %v291 = vld [vmem:[#allocation4 + $0x108] sm:$0xff]
    %v292 = vld [vmem:[#allocation4 + $0x110] sm:$0xff]
    %v293 = vld [vmem:[#allocation4 + $0x118] sm:$0xff]
    %v294 = vld [vmem:[#allocation4 + $0x120] sm:$0xff]
    %v295 = vld [vmem:[#allocation4 + $0x128] sm:$0xff]
    %v296 = vld [vmem:[#allocation4 + $0x130] sm:$0xff]
    %v297 = vld [vmem:[#allocation4 + $0x138] sm:$0xff]
    %v298 = vld [vmem:[#allocation4 + $0x140] sm:$0xff]
    %v299 = vld [vmem:[#allocation4 + $0x148] sm:$0xff]
    %v300 = vld [vmem:[#allocation4 + $0x150] sm:$0xff]
    %v301 = vld [vmem:[#allocation4 + $0x158] sm:$0xff]
    %v302 = vld [vmem:[#allocation4 + $0x160] sm:$0xff]
    %v303 = vld [vmem:[#allocation4 + $0x168] sm:$0xff]
    %v304 = vld [vmem:[#allocation4 + $0x170] sm:$0xff]
    %v305 = vld [vmem:[#allocation4 + $0x178] sm:$0xff]
    %v306 = vld [vmem:[#allocation4 + $0x180] sm:$0xff]
    %v307 = vld [vmem:[#allocation4 + $0x188] sm:$0xff]
    %v308 = vld [vmem:[#allocation4 + $0x190] sm:$0xff]
    %v309 = vld [vmem:[#allocation4 + $0x198] sm:$0xff]
    %v310 = vld [vmem:[#allocation4 + $0x1a0] sm:$0xff]
    %v311 = vld [vmem:[#allocation4 + $0x1a8] sm:$0xff]
    %v312 = vld [vmem:[#allocation4 + $0x1b0] sm:$0xff]
    %v313 = vld [vmem:[#allocation4 + $0x1b8] sm:$0xff]
    %v314 = vld [vmem:[#allocation4 + $0x1c0] sm:$0xff]
    %v315 = vld [vmem:[#allocation4 + $0x1c8] sm:$0xff]
    %v316 = vld [vmem:[#allocation4 + $0x1d0] sm:$0xff]
    %v317 = vld [vmem:[#allocation4 + $0x1d8] sm:$0xff]
    %v318 = vld [vmem:[#allocation4 + $0x1e0] sm:$0xff]
    %v319 = vld [vmem:[#allocation4 + $0x1e8] sm:$0xff]
    %v320 = vld [vmem:[#allocation4 + $0x1f0] sm:$0xff]
    %v321 = vld [vmem:[#allocation4 + $0x1f8] sm:$0xff]
    %v322 = vld [vmem:[%s4] sm:$0x3]
    %v324 = vlaneseq
    %v325 = vshrl.u32 %v324, 7
    %v326 = vsub.s32 0, %v325
    %v327 = vrot.slane %v322, %v326
    %v328 = vlaneseq
    %v329 = vshrl.u32 %v328, 7
    %v330 = vsub.s32 1, %v329
    %v331 = vrot.slane %v322, %v330
    %v398 = vunpack.c.l.b16 %v258
    %v399 = vunpack.c.h.b16 %v258
    %v400 = vunpack.c.l.b16 %v259
    %v401 = vunpack.c.h.b16 %v259
    %v402 = vunpack.c.l.b16 %v260
    %v403 = vunpack.c.h.b16 %v260
    %v404 = vunpack.c.l.b16 %v261
    %v405 = vunpack.c.h.b16 %v261
    %v406 = vunpack.c.l.b16 %v262
    %v407 = vunpack.c.h.b16 %v262
    %v408 = vunpack.c.l.b16 %v263
    %v409 = vunpack.c.h.b16 %v263
    %v410 = vunpack.c.l.b16 %v264
    %v411 = vunpack.c.h.b16 %v264
    %v412 = vunpack.c.l.b16 %v265
    %v413 = vunpack.c.h.b16 %v265
    %v414 = vunpack.c.l.b16 %v266
    %v415 = vunpack.c.h.b16 %v266
    %v416 = vunpack.c.l.b16 %v267
    %v417 = vunpack.c.h.b16 %v267
    %v418 = vunpack.c.l.b16 %v268
    %v419 = vunpack.c.h.b16 %v268
    %v420 = vunpack.c.l.b16 %v269
    %v421 = vunpack.c.h.b16 %v269
    %v422 = vunpack.c.l.b16 %v270
    %v423 = vunpack.c.h.b16 %v270
    %v424 = vunpack.c.l.b16 %v271
    %v425 = vunpack.c.h.b16 %v271
    %v426 = vunpack.c.l.b16 %v272
    %v427 = vunpack.c.h.b16 %v272
    %v428 = vunpack.c.l.b16 %v273
    %v429 = vunpack.c.h.b16 %v273
    %v430 = vunpack.c.l.b16 %v274
    %v431 = vunpack.c.h.b16 %v274
    %v432 = vunpack.c.l.b16 %v275
    %v433 = vunpack.c.h.b16 %v275
    %v434 = vunpack.c.l.b16 %v276
    %v435 = vunpack.c.h.b16 %v276
    %v436 = vunpack.c.l.b16 %v277
    %v437 = vunpack.c.h.b16 %v277
    %v438 = vunpack.c.l.b16 %v278
    %v439 = vunpack.c.h.b16 %v278
    %v440 = vunpack.c.l.b16 %v279
    %v441 = vunpack.c.h.b16 %v279
    %v442 = vunpack.c.l.b16 %v280
    %v443 = vunpack.c.h.b16 %v280
    %v444 = vunpack.c.l.b16 %v281
    %v445 = vunpack.c.h.b16 %v281
    %v446 = vunpack.c.l.b16 %v282
    %v447 = vunpack.c.h.b16 %v282
    %v448 = vunpack.c.l.b16 %v283
    %v449 = vunpack.c.h.b16 %v283
    %v450 = vunpack.c.l.b16 %v284
    %v451 = vunpack.c.h.b16 %v284
    %v452 = vunpack.c.l.b16 %v285
    %v453 = vunpack.c.h.b16 %v285
    %v454 = vunpack.c.l.b16 %v286
    %v455 = vunpack.c.h.b16 %v286
    %v456 = vunpack.c.l.b16 %v287
    %v457 = vunpack.c.h.b16 %v287
    %v458 = vunpack.c.l.b16 %v288
    %v459 = vunpack.c.h.b16 %v288
    %v460 = vunpack.c.l.b16 %v289
    %v461 = vunpack.c.h.b16 %v289
    %v462 = vunpack.c.l.b16 %v290
    %v463 = vunpack.c.h.b16 %v290
    %v464 = vunpack.c.l.b16 %v291
    %v465 = vunpack.c.h.b16 %v291
    %v466 = vunpack.c.l.b16 %v292
    %v467 = vunpack.c.h.b16 %v292
    %v468 = vunpack.c.l.b16 %v293
    %v469 = vunpack.c.h.b16 %v293
    %v470 = vunpack.c.l.b16 %v294
    %v471 = vunpack.c.h.b16 %v294
    %v472 = vunpack.c.l.b16 %v295
    %v473 = vunpack.c.h.b16 %v295
    %v474 = vunpack.c.l.b16 %v296
    %v475 = vunpack.c.h.b16 %v296
    %v476 = vunpack.c.l.b16 %v297
    %v477 = vunpack.c.h.b16 %v297
    %v478 = vunpack.c.l.b16 %v298
    %v479 = vunpack.c.h.b16 %v298
    %v480 = vunpack.c.l.b16 %v299
    %v481 = vunpack.c.h.b16 %v299
    %v482 = vunpack.c.l.b16 %v300
    %v483 = vunpack.c.h.b16 %v300
    %v484 = vunpack.c.l.b16 %v301
    %v485 = vunpack.c.h.b16 %v301
    %v486 = vunpack.c.l.b16 %v302
    %v487 = vunpack.c.h.b16 %v302
    %v488 = vunpack.c.l.b16 %v303
    %v489 = vunpack.c.h.b16 %v303
    %v490 = vunpack.c.l.b16 %v304
    %v491 = vunpack.c.h.b16 %v304
    %v492 = vunpack.c.l.b16 %v305
    %v493 = vunpack.c.h.b16 %v305
    %v494 = vunpack.c.l.b16 %v306
    %v495 = vunpack.c.h.b16 %v306
    %v496 = vunpack.c.l.b16 %v307
    %v497 = vunpack.c.h.b16 %v307
    %v498 = vunpack.c.l.b16 %v308
    %v499 = vunpack.c.h.b16 %v308
    %v500 = vunpack.c.l.b16 %v309
    %v501 = vunpack.c.h.b16 %v309
    %v502 = vunpack.c.l.b16 %v310
    %v503 = vunpack.c.h.b16 %v310
    %v504 = vunpack.c.l.b16 %v311
    %v505 = vunpack.c.h.b16 %v311
    %v506 = vunpack.c.l.b16 %v312
    %v507 = vunpack.c.h.b16 %v312
    %v508 = vunpack.c.l.b16 %v313
    %v509 = vunpack.c.h.b16 %v313
    %v510 = vunpack.c.l.b16 %v314
    %v511 = vunpack.c.h.b16 %v314
    %v512 = vunpack.c.l.b16 %v315
    %v513 = vunpack.c.h.b16 %v315
    %v514 = vunpack.c.l.b16 %v316
    %v515 = vunpack.c.h.b16 %v316
    %v516 = vunpack.c.l.b16 %v317
    %v517 = vunpack.c.h.b16 %v317
    %v518 = vunpack.c.l.b16 %v318
    %v519 = vunpack.c.h.b16 %v318
    %v520 = vunpack.c.l.b16 %v319
    %v521 = vunpack.c.h.b16 %v319
    %v522 = vunpack.c.l.b16 %v320
    %v523 = vunpack.c.h.b16 %v320
    %v524 = vunpack.c.l.b16 %v321
    %v525 = vunpack.c.h.b16 %v321
    %v526 = vpack.c.b16 %v400, %v398
    %v527 = vpack.c.b16 %v401, %v399
    %v528 = vpack.c.b16 %v404, %v402
    %v529 = vpack.c.b16 %v405, %v403
    %v530 = vpack.c.b16 %v408, %v406
    %v531 = vpack.c.b16 %v409, %v407
    %v532 = vpack.c.b16 %v412, %v410
    %v533 = vpack.c.b16 %v413, %v411
    %v534 = vpack.c.b16 %v416, %v414
    %v535 = vpack.c.b16 %v417, %v415
    %v536 = vpack.c.b16 %v420, %v418
    %v537 = vpack.c.b16 %v421, %v419
    %v538 = vpack.c.b16 %v424, %v422
    %v539 = vpack.c.b16 %v425, %v423
    %v540 = vpack.c.b16 %v428, %v426
    %v541 = vpack.c.b16 %v429, %v427
    %v542 = vpack.c.b16 %v432, %v430
    %v543 = vpack.c.b16 %v433, %v431
    %v544 = vpack.c.b16 %v436, %v434
    %v545 = vpack.c.b16 %v437, %v435
    %v546 = vpack.c.b16 %v440, %v438
    %v547 = vpack.c.b16 %v441, %v439
    %v548 = vpack.c.b16 %v444, %v442
    %v549 = vpack.c.b16 %v445, %v443
    %v550 = vpack.c.b16 %v448, %v446
    %v551 = vpack.c.b16 %v449, %v447
    %v552 = vpack.c.b16 %v452, %v450
    %v553 = vpack.c.b16 %v453, %v451
    %v554 = vpack.c.b16 %v456, %v454
    %v555 = vpack.c.b16 %v457, %v455
    %v556 = vpack.c.b16 %v460, %v458
    %v557 = vpack.c.b16 %v461, %v459
    %v558 = vpack.c.b16 %v464, %v462
    %v559 = vpack.c.b16 %v465, %v463
    %v560 = vpack.c.b16 %v468, %v466
    %v561 = vpack.c.b16 %v469, %v467
    %v562 = vpack.c.b16 %v472, %v470
    %v563 = vpack.c.b16 %v473, %v471
    %v564 = vpack.c.b16 %v476, %v474
    %v565 = vpack.c.b16 %v477, %v475
    %v566 = vpack.c.b16 %v480, %v478
    %v567 = vpack.c.b16 %v481, %v479
    %v568 = vpack.c.b16 %v484, %v482
    %v569 = vpack.c.b16 %v485, %v483
    %v570 = vpack.c.b16 %v488, %v486
    %v571 = vpack.c.b16 %v489, %v487
    %v572 = vpack.c.b16 %v492, %v490
    %v573 = vpack.c.b16 %v493, %v491
    %v574 = vpack.c.b16 %v496, %v494
    %v575 = vpack.c.b16 %v497, %v495
    %v576 = vpack.c.b16 %v500, %v498
    %v577 = vpack.c.b16 %v501, %v499
    %v578 = vpack.c.b16 %v504, %v502
    %v579 = vpack.c.b16 %v505, %v503
    %v580 = vpack.c.b16 %v508, %v506
    %v581 = vpack.c.b16 %v509, %v507
    %v582 = vpack.c.b16 %v512, %v510
    %v583 = vpack.c.b16 %v513, %v511
    %v584 = vpack.c.b16 %v516, %v514
    %v585 = vpack.c.b16 %v517, %v515
    %v586 = vpack.c.b16 %v520, %v518
    %v587 = vpack.c.b16 %v521, %v519
    %v588 = vpack.c.b16 %v524, %v522
    %v589 = vpack.c.b16 %v525, %v523
    %654 = vmatprep.subr.bf16.mxu0 %v527
    %655 = vmatpush1.bf16.msra.mxu0 %v526
    %656 = vmatprep.subr.bf16.mxu0 %v529
    %657 = vmatpush1.bf16.msra.mxu0 %v528
    %658 = vmatprep.subr.bf16.mxu0 %v531
    %659 = vmatpush1.bf16.msra.mxu0 %v530
    %660 = vmatprep.subr.bf16.mxu0 %v533
    %661 = vmatpush1.bf16.msra.mxu0 %v532
    %662 = vmatprep.subr.bf16.mxu0 %v535
    %663 = vmatpush1.bf16.msra.mxu0 %v534
    %664 = vmatprep.subr.bf16.mxu0 %v537
    %665 = vmatpush1.bf16.msra.mxu0 %v536
    %666 = vmatprep.subr.bf16.mxu0 %v539
    %667 = vmatpush1.bf16.msra.mxu0 %v538
    %668 = vmatprep.subr.bf16.mxu0 %v541
    %669 = vmatpush1.bf16.msra.mxu0 %v540
    %670 = vmatprep.subr.bf16.mxu0 %v543
    %671 = vmatpush1.bf16.msra.mxu0 %v542
    %672 = vmatprep.subr.bf16.mxu0 %v545
    %673 = vmatpush1.bf16.msra.mxu0 %v544
    %674 = vmatprep.subr.bf16.mxu0 %v547
    %675 = vmatpush1.bf16.msra.mxu0 %v546
    %676 = vmatprep.subr.bf16.mxu0 %v549
    %677 = vmatpush1.bf16.msra.mxu0 %v548
    %678 = vmatprep.subr.bf16.mxu0 %v551
    %679 = vmatpush1.bf16.msra.mxu0 %v550
    %680 = vmatprep.subr.bf16.mxu0 %v553
    %681 = vmatpush1.bf16.msra.mxu0 %v552
    %682 = vmatprep.subr.bf16.mxu0 %v555
    %683 = vmatpush1.bf16.msra.mxu0 %v554
    %684 = vmatprep.subr.bf16.mxu0 %v557
    %685 = vmatpush1.bf16.msra.mxu0 %v556
    %686 = vmatprep.mubr.bf16.mxu0 %v255
    %687 = vmatmul.mubr.bf16.gmra.mrb[0].mxu0 %v254
    %v688 = vpop.f32.mrb[0].mxu0
    %v689 = vadd.f32 %v327, %v688
    %v690 = vpop.f32.mrb[0].mxu0
    %v691 = vadd.f32 %v331, %v690
    %v692 = vpop.f32.mrb[0].mxu0
    %v693 = vpop.f32.mrb[0].mxu0
    %694 = vdwg.mxu0
    %695 = vmatprep.subr.bf16.mxu0 %v559
    %696 = vmatpush1.bf16.msra.mxu0 %v558
    %697 = vmatprep.subr.bf16.mxu0 %v561
    %698 = vmatpush1.bf16.msra.mxu0 %v560
    %699 = vmatprep.subr.bf16.mxu0 %v563
    %700 = vmatpush1.bf16.msra.mxu0 %v562
    %701 = vmatprep.subr.bf16.mxu0 %v565
    %702 = vmatpush1.bf16.msra.mxu0 %v564
    %703 = vmatprep.subr.bf16.mxu0 %v567
    %704 = vmatpush1.bf16.msra.mxu0 %v566
    %705 = vmatprep.subr.bf16.mxu0 %v569
    %706 = vmatpush1.bf16.msra.mxu0 %v568
    %707 = vmatprep.subr.bf16.mxu0 %v571
    %708 = vmatpush1.bf16.msra.mxu0 %v570
    %709 = vmatprep.subr.bf16.mxu0 %v573
    %710 = vmatpush1.bf16.msra.mxu0 %v572
    %711 = vmatprep.subr.bf16.mxu0 %v575
    %712 = vmatpush1.bf16.msra.mxu0 %v574
    %713 = vmatprep.subr.bf16.mxu0 %v577
    %714 = vmatpush1.bf16.msra.mxu0 %v576
    %715 = vmatprep.subr.bf16.mxu0 %v579
    %716 = vmatpush1.bf16.msra.mxu0 %v578
    %717 = vmatprep.subr.bf16.mxu0 %v581
    %718 = vmatpush1.bf16.msra.mxu0 %v580
    %719 = vmatprep.subr.bf16.mxu0 %v583
    %720 = vmatpush1.bf16.msra.mxu0 %v582
    %721 = vmatprep.subr.bf16.mxu0 %v585
    %722 = vmatpush1.bf16.msra.mxu0 %v584
    %723 = vmatprep.subr.bf16.mxu0 %v587
    %724 = vmatpush1.bf16.msra.mxu0 %v586
    %725 = vmatprep.subr.bf16.mxu0 %v589
    %726 = vmatpush1.bf16.msra.mxu0 %v588
    %727 = vmatprep.mubr.bf16.mxu0 %v257
    %728 = vmatmul.mubr.bf16.gmra.mrb[0].mxu0 %v256
    %v729 = vpop.f32.mrb[0].mxu0
    %v730 = vadd.f32 %v689, %v729
    %v731 = vpop.f32.mrb[0].mxu0
    %v732 = vadd.f32 %v691, %v731
    %v733 = vpop.f32.mrb[0].mxu0
    %v734 = vpop.f32.mrb[0].mxu0
    %735 = vdwg.mxu0
    %v736 = vmax.f32 %v730, 0.0
    %v737 = vmax.f32 %v732, 0.0
    %v738 = vpack.c.bf16 %v736, %v736
    %v739 = vpack.c.bf16 %v737, %v737
    %v740 = vld [vmem:[#allocation6] sm:$0xf]
    %v741 = vld [vmem:[#allocation6 + $0x4] sm:$0xf]
    %v742 = vld [vmem:[#allocation6 + $0x8] sm:$0xf]
    %v743 = vld [vmem:[#allocation6 + $0xc] sm:$0xf]
    %v744 = vld [vmem:[#allocation6 + $0x10] sm:$0xf]
    %v745 = vld [vmem:[#allocation6 + $0x14] sm:$0xf]
    %v746 = vld [vmem:[#allocation6 + $0x18] sm:$0xf]
    %v747 = vld [vmem:[#allocation6 + $0x1c] sm:$0xf]
    %v748 = vld [vmem:[#allocation6 + $0x20] sm:$0xf]
    %v749 = vld [vmem:[#allocation6 + $0x24] sm:$0xf]
    %v750 = vld [vmem:[#allocation6 + $0x28] sm:$0xf]
    %v751 = vld [vmem:[#allocation6 + $0x2c] sm:$0xf]
    %v752 = vld [vmem:[#allocation6 + $0x30] sm:$0xf]
    %v753 = vld [vmem:[#allocation6 + $0x34] sm:$0xf]
    %v754 = vld [vmem:[#allocation6 + $0x38] sm:$0xf]
    %v755 = vld [vmem:[#allocation6 + $0x3c] sm:$0xf]
    %v756 = vld [vmem:[#allocation6 + $0x40] sm:$0xf]
    %v757 = vld [vmem:[#allocation6 + $0x44] sm:$0xf]
    %v758 = vld [vmem:[#allocation6 + $0x48] sm:$0xf]
    %v759 = vld [vmem:[#allocation6 + $0x4c] sm:$0xf]
    %v760 = vld [vmem:[#allocation6 + $0x50] sm:$0xf]
    %v761 = vld [vmem:[#allocation6 + $0x54] sm:$0xf]
    %v762 = vld [vmem:[#allocation6 + $0x58] sm:$0xf]
    %v763 = vld [vmem:[#allocation6 + $0x5c] sm:$0xf]
    %v764 = vld [vmem:[#allocation6 + $0x60] sm:$0xf]
    %v765 = vld [vmem:[#allocation6 + $0x64] sm:$0xf]
    %v766 = vld [vmem:[#allocation6 + $0x68] sm:$0xf]
    %v767 = vld [vmem:[#allocation6 + $0x6c] sm:$0xf]
    %v768 = vld [vmem:[#allocation6 + $0x70] sm:$0xf]
    %v769 = vld [vmem:[#allocation6 + $0x74] sm:$0xf]
    %v770 = vld [vmem:[#allocation6 + $0x78] sm:$0xf]
    %v771 = vld [vmem:[#allocation6 + $0x7c] sm:$0xf]
    %v772 = vld [vmem:[%s6] sm:$0x1]
    %v774 = vlaneseq
    %v775 = vshrl.u32 %v774, 7
    %v776 = vsub.s32 0, %v775
    %v777 = vrot.slane %v772, %v776
    %v811 = vunpack.c.l.b16 %v740
    %v812 = vunpack.c.l.b16 %v741
    %v813 = vunpack.c.l.b16 %v742
    %v814 = vunpack.c.l.b16 %v743
    %v815 = vunpack.c.l.b16 %v744
    %v816 = vunpack.c.l.b16 %v745
    %v817 = vunpack.c.l.b16 %v746
    %v818 = vunpack.c.l.b16 %v747
    %v819 = vunpack.c.l.b16 %v748
    %v820 = vunpack.c.l.b16 %v749
    %v821 = vunpack.c.l.b16 %v750
    %v822 = vunpack.c.l.b16 %v751
    %v823 = vunpack.c.l.b16 %v752
    %v824 = vunpack.c.l.b16 %v753
    %v825 = vunpack.c.l.b16 %v754
    %v826 = vunpack.c.l.b16 %v755
    %v827 = vunpack.c.l.b16 %v756
    %v828 = vunpack.c.l.b16 %v757
    %v829 = vunpack.c.l.b16 %v758
    %v830 = vunpack.c.l.b16 %v759
    %v831 = vunpack.c.l.b16 %v760
    %v832 = vunpack.c.l.b16 %v761
    %v833 = vunpack.c.l.b16 %v762
    %v834 = vunpack.c.l.b16 %v763
    %v835 = vunpack.c.l.b16 %v764
    %v836 = vunpack.c.l.b16 %v765
    %v837 = vunpack.c.l.b16 %v766
    %v838 = vunpack.c.l.b16 %v767
    %v839 = vunpack.c.l.b16 %v768
    %v840 = vunpack.c.l.b16 %v769
    %v841 = vunpack.c.l.b16 %v770
    %v842 = vunpack.c.l.b16 %v771
    %v843 = vpack.c.b16 %v812, %v811
    %v844 = vpack.c.b16 %v814, %v813
    %v845 = vpack.c.b16 %v816, %v815
    %v846 = vpack.c.b16 %v818, %v817
    %v847 = vpack.c.b16 %v820, %v819
    %v848 = vpack.c.b16 %v822, %v821
    %v849 = vpack.c.b16 %v824, %v823
    %v850 = vpack.c.b16 %v826, %v825
    %v851 = vpack.c.b16 %v828, %v827
    %v852 = vpack.c.b16 %v830, %v829
    %v853 = vpack.c.b16 %v832, %v831
    %v854 = vpack.c.b16 %v834, %v833
    %v855 = vpack.c.b16 %v836, %v835
    %v856 = vpack.c.b16 %v838, %v837
    %v857 = vpack.c.b16 %v840, %v839
    %v858 = vpack.c.b16 %v842, %v841
    %875 = vmatprep.subr.bf16.mxu0 0
    %876 = vmatpush1.bf16.msra.mxu0 %v843
    %877 = vmatprep.subr.bf16.mxu0 0
    %878 = vmatpush1.bf16.msra.mxu0 %v844
    %879 = vmatprep.subr.bf16.mxu0 0
    %880 = vmatpush1.bf16.msra.mxu0 %v845
    %881 = vmatprep.subr.bf16.mxu0 0
    %882 = vmatpush1.bf16.msra.mxu0 %v846
    %883 = vmatprep.subr.bf16.mxu0 0
    %884 = vmatpush1.bf16.msra.mxu0 %v847
    %885 = vmatprep.subr.bf16.mxu0 0
    %886 = vmatpush1.bf16.msra.mxu0 %v848
    %887 = vmatprep.subr.bf16.mxu0 0
    %888 = vmatpush1.bf16.msra.mxu0 %v849
    %889 = vmatprep.subr.bf16.mxu0 0
    %890 = vmatpush1.bf16.msra.mxu0 %v850
    %891 = vmatprep.subr.bf16.mxu0 0
    %892 = vmatpush1.bf16.msra.mxu0 %v851
    %893 = vmatprep.subr.bf16.mxu0 0
    %894 = vmatpush1.bf16.msra.mxu0 %v852
    %895 = vmatprep.subr.bf16.mxu0 0
    %896 = vmatpush1.bf16.msra.mxu0 %v853
    %897 = vmatprep.subr.bf16.mxu0 0
    %898 = vmatpush1.bf16.msra.mxu0 %v854
    %899 = vmatprep.subr.bf16.mxu0 0
    %900 = vmatpush1.bf16.msra.mxu0 %v855
    %901 = vmatprep.subr.bf16.mxu0 0
    %902 = vmatpush1.bf16.msra.mxu0 %v856
    %903 = vmatprep.subr.bf16.mxu0 0
    %904 = vmatpush1.bf16.msra.mxu0 %v857
    %905 = vmatprep.subr.bf16.mxu0 0
    %906 = vmatpush1.bf16.msra.mxu0 %v858
    %907 = vmatprep.mubr.bf16.mxu0 %v739
    %908 = vmatmul.mubr.bf16.gmra.mrb[0].mxu0 %v738
    %v909 = vpop.f32.mrb[0].mxu0
    %v910 = vadd.f32 %v777, %v909
    %v911 = vpop.f32.mrb[0].mxu0
    %v912 = vpop.f32.mrb[0].mxu0
    %v913 = vpop.f32.mrb[0].mxu0
    %914 = vdwg.mxu0
    %915 = vst [vmem:[%s7] sm:$0xff] %v910
    // Predicated region
    $region42: #{receptor_net_forward.1} parent=1 // pred_check
      _
    $region43: #{receptor_net_forward.1} parent=1 // pred_check_branch
      %917 = sbr.rel (0) target = $region45
    $region44: #{receptor_net_forward.1} parent=1 // pred_region
      _
    $region45: #{receptor_net_forward.1} parent=1 // pred_fallthru
      _
    // Predicated region
    $region46: #{receptor_net_forward.1} parent=1 // pred_check
      _
    $region47: #{receptor_net_forward.1} parent=1 // pred_check_branch
      %919 = sbr.rel (0) target = $region49
    $region48: #{receptor_net_forward.1} parent=1 // pred_region
      _
    $region49: #{receptor_net_forward.1} parent=1 // pred_fallthru
      _
    %920 = vsyncpa [#allocation3], 1
    %921 = vsyncpa [#allocation5], 1

</llo_original>
